<compile_context>
chip_gen: v7x
topology: tpu7x:2x2x1
jax: 0.10.0
libtpu: 0.0.40
codegen_flags: <defaults>
</compile_context>

<pallas_src>
import functools

import jax
import jax.numpy as jnp
from jax.experimental import pallas as pl
from jax.experimental.pallas import tpu as pltpu

BINS = 30
MOMENTUM = 0.99
IGNORE = -1
EPS = 1e-7


def _round_up(x, m):
    return ((x + m - 1) // m) * m


def _cdiv(a, b):
    return (a + b - 1) // b


def _gdp_kernel(preds_ref, tgt_ref, hist_ref, lbin_ref, *, mask_dtype):
    """Fused softmax/CE/gradient + MXU-reduced histogram / per-bucket CE sums.

    preds_ref : (1, C, T)       logits; classes on sublanes, pixels on lanes
    tgt_ref   : (1, 1, T)       int32 labels (-1 = ignore / padding)
    hist_ref  : (1, 1, BINS, 1) histc counts accumulator  (per split, per batch)
    lbin_ref  : (1, 1, BINS, 1) per-bucketize-bin CE sum accumulator
    """
    @pl.when(pl.program_id(2) == 0)
    def _():
        hist_ref[...] = jnp.zeros_like(hist_ref)
        lbin_ref[...] = jnp.zeros_like(lbin_ref)

    x = preds_ref[0].astype(jnp.float32)                  # (C, T)
    t = tgt_ref[0]                                        # (1, T) int32
    valid = t != IGNORE                                   # (1, T)
    npix = x.shape[1]

    # --- softmax statistics over classes (sublane axis); exp computed once ---
    m = jnp.max(x, axis=0, keepdims=True)                 # (1, T)
    z = x - m                                             # (C, T)
    s = jnp.sum(jnp.exp(z), axis=0, keepdims=True)        # (1, T)

    cls = jax.lax.broadcasted_iota(jnp.int32, x.shape, 0)           # (C, T)
    # t == -1 never matches a class id, so no extra '& valid' is needed.
    z_y = jnp.sum(jnp.where(cls == t, z, 0.0), axis=0, keepdims=True)  # (1, T)

    # p(target) via EUP exp + approximate reciprocal (free slot); only drives
    # binning at 1/BINS granularity so approx is fine.
    prob_y = jnp.exp(z_y) * pl.reciprocal(s, approx=True)           # (1, T)
    g = jnp.where(valid, jnp.abs(prob_y - 1.0), -1.0)               # (1, T)
    # cross_entropy(..., reduction='none'): garbage on ignored pixels, but those
    # never hit a bucketize bin (their index code is out of range below).
    ce = jnp.log(s) - z_y                                           # (1, T)

    # --- per-pixel bin indices (out-of-range codes drop ignored pixels) ---
    g30 = g * BINS
    # torch.histc(g, BINS, min=0, max=1): bin = floor(g*BINS); g == 1 -> last bin;
    # ignored pixels (g = -1) map to -30 and never match any bin row.
    hidx = jnp.minimum(jnp.floor(g30), BINS - 1).astype(jnp.int32)       # (1, T)
    # torch.bucketize(g, edges): bin b <=> edges[b] < g <= edges[b+1], which is
    # ceil(g*BINS) - 1;  g == 0 -> -1 (weight 0, matches inds == 0); g = -1 -> -31.
    bidx = jnp.minimum(jnp.ceil(g30) - 1.0, BINS - 1).astype(jnp.int32)  # (1, T)

    # --- one-hot bin masks: one equality compare per bin, no extra selects ---
    biota = jax.lax.broadcasted_iota(jnp.int32, (BINS, npix), 0)         # (BINS, T)
    hist_oh = (biota == hidx).astype(mask_dtype)                         # (BINS, T)
    buck_oh = (biota == bidx).astype(mask_dtype)                         # (BINS, T)

    # RHS rows: [ones, ce, 0, ..., 0]  (8 sublanes keeps the MXU operand tidy).
    riota = jax.lax.broadcasted_iota(jnp.int32, (8, npix), 0)
    rhs = jnp.where(riota == 0, 1.0,
                    jnp.where(riota == 1, ce, 0.0)).astype(mask_dtype)   # (8, T)

    # --- lane (pixel) reduction on the MXU: A @ B^T, contract the pixel axis ---
    dn = (((1,), (1,)), ((), ()))
    res_h = jax.lax.dot_general(hist_oh, rhs, dn,
                                preferred_element_type=jnp.float32)      # (BINS, 8)
    res_b = jax.lax.dot_general(buck_oh, rhs, dn,
                                preferred_element_type=jnp.float32)      # (BINS, 8)

    hist_ref[0, 0] += res_h[:, 0:1]       # counts column (RHS row 0 = ones)
    lbin_ref[0, 0] += res_b[:, 1:2]       # CE-weighted column (RHS row 1 = ce)


def gdp_loss(preds, targets, acc_sum, *, tile=4096, num_splits=2,
             mask_dtype=jnp.float32):
    """Functional GDPLoss.forward (default flags): returns (loss, new acc_sum).

    preds:   (N, C, H, W) float32 or bfloat16 logits (bf16 recommended on v5e).
    targets: (N, H, W) int labels, -1 = ignore.
    acc_sum: (BINS,) float32 EMA state (the module's self.acc_sum buffer).
    mask_dtype=jnp.bfloat16 is recommended on v6e/v7x (bf16 VPU/MXU); keep the
    default float32 on v5e (no bf16 VALU) and for exact parity checks.
    """
    N, C, H, W = preds.shape
    HW = H * W
    p3 = preds.reshape(N, C, HW)                       # free reshape (no transpose)
    t3 = targets.reshape(N, 1, HW).astype(jnp.int32)

    # Pixel tile on the lane axis: large (amortizes per-step overhead), multiple
    # of 128, clamped to the image.  Per-step block is only ~C*tile*4 B, so this
    # fits comfortably in VMEM on all generations (incl. v7x's 64 MiB); on v5e a
    # larger `tile` (8192) can be used to hide DMA once compute is reduced.
    t_thw = _round_up(min(tile, _round_up(HW, 128)), 128)
    n_tiles = _cdiv(HW, t_thw)
    S = max(1, min(num_splits, n_tiles))   # pixel-split "parallel" axis (v7x megacore)
    K = _cdiv(n_tiles, S)                  # accumulation steps per split
    HWp = S * K * t_thw
    pad = HWp - HW
    if pad:
        p3 = jnp.pad(p3, ((0, 0), (0, 0), (0, pad)))
        t3 = jnp.pad(t3, ((0, 0), (0, 0), (0, pad)), constant_values=IGNORE)

    kernel = functools.partial(_gdp_kernel, mask_dtype=mask_dtype)
    hist_o, lbin_o = pl.pallas_call(
        kernel,
        out_shape=(
            jax.ShapeDtypeStruct((S, N, BINS, 1), jnp.float32),
            jax.ShapeDtypeStruct((S, N, BINS, 1), jnp.float32),
        ),
        grid=(S, N, K),
        in_specs=[
            pl.BlockSpec((1, C, t_thw), lambda s, n, k: (n, 0, s * K + k)),
            pl.BlockSpec((1, 1, t_thw), lambda s, n, k: (n, 0, s * K + k)),
        ],
        out_specs=(
            pl.BlockSpec((1, 1, BINS, 1), lambda s, n, k: (s, n, 0, 0)),
            pl.BlockSpec((1, 1, BINS, 1), lambda s, n, k: (s, n, 0, 0)),
        ),
        # Split & batch axes parallel (per-(s, n) accumulators => race free on
        # megacore); the pixel-tile axis is the sequential accumulation axis.
        compiler_params=pltpu.CompilerParams(
            dimension_semantics=("parallel", "parallel", "arbitrary")),
    )(p3, t3)

    # ---- tiny (30-element) bin bookkeeping in plain JAX ----
    hist = jnp.sum(hist_o[..., 0], axis=(0, 1))          # (BINS,) histc counts
    loss_bins = jnp.sum(lbin_o[..., 0], axis=(0, 1))     # (BINS,) per-bucket CE sums
    vcnt = jnp.sum(hist)     # every valid pixel lands in exactly one histc bin

    bins_sym = 0.5 * (hist + jnp.flip(hist, axis=0))
    if MOMENTUM > 0:
        acc_new = MOMENTUM * acc_sum + (1.0 - MOMENTUM) * bins_sym
    else:
        acc_new = bins_sym

    wt = jnp.where(acc_new != 0, 1.0 - acc_new / (jnp.sum(acc_new) + EPS), 0.0)
    wt = wt / (jnp.max(wt) + EPS)                        # dense bins_weight table

    # sum_p ce_p * wt[bucket(p)]  ==  dot(per-bucket CE sums, wt); divisor 1.0
    loss = jnp.dot(loss_bins, wt) / (vcnt + EPS)
    return loss, acc_new


def _reference_loss(preds, targets, acc_sum):
    """Pure-JAX mirror of the PyTorch forward (default flags) for validation."""
    N, C, H, W = preds.shape
    p2 = jnp.transpose(preds, (0, 2, 3, 1)).reshape(-1, C).astype(jnp.float32)
    probs = jax.nn.softmax(p2, axis=1)
    t = targets.reshape(-1)
    valid = t != IGNORE
    lbl = jnp.where(valid, t, C)
    oh = jax.nn.one_hot(lbl, C + 1, dtype=jnp.float32)[:, :-1]
    prob_y = jnp.sum(probs * oh, axis=1)
    g = jnp.where(valid, jnp.abs(prob_y - 1.0), -1.0)

    in_range = (g >= 0.0) & (g <= 1.0)
    hidx = jnp.clip(jnp.floor(g * BINS), 0, BINS - 1).astype(jnp.int32)
    hist = jnp.sum(jax.nn.one_hot(hidx, BINS, dtype=jnp.float32)
                   * in_range[:, None].astype(jnp.float32), axis=0)
    hist = 0.5 * (hist + jnp.flip(hist, axis=0))
    acc = MOMENTUM * acc_sum + (1.0 - MOMENTUM) * hist

    edges = jnp.arange(BINS + 1, dtype=jnp.float32) / BINS
    edges = edges.at[-1].add(0.001)
    inds = jnp.sum((edges[None, :] < g[:, None]).astype(jnp.int32), axis=1)

    wt = jnp.where(acc != 0, 1.0 - acc / (jnp.sum(acc) + EPS), 0.0)
    wt = wt / (jnp.max(wt) + EPS)
    w = jnp.where((inds > 0) & (inds <= BINS), wt[jnp.clip(inds - 1, 0, BINS - 1)], 0.0)

    logp = jax.nn.log_softmax(p2, axis=1)
    ce = -jnp.sum(logp * oh, axis=1)
    return jnp.sum(ce * w) / (jnp.sum(valid) + EPS)


if __name__ == "__main__":
    key = jax.random.PRNGKey(0)
    k1, k2 = jax.random.split(key)
    N, C, H, W = 2, 7, 16, 16                            # class_num=7 (module default)
    preds = jax.random.normal(k1, (N, C, H, W), dtype=jnp.float32)
    targets = jax.random.randint(k2, (N, H, W), minval=-1, maxval=C, dtype=jnp.int32)
    acc_sum = jnp.zeros((BINS,), dtype=jnp.float32)      # GDPLoss.acc_sum initial state

    loss, acc_new = gdp_loss(preds, targets, acc_sum)
    loss = jax.block_until_ready(loss)
    acc_new = jax.block_until_ready(acc_new)

    ref = _reference_loss(preds, targets, acc_sum)
    assert jnp.isfinite(loss), "non-finite loss"
    assert acc_new.shape == (BINS,)
    # Tolerance leaves room for the approximate-reciprocal / binning boundary
    # effects noted in the review; structural errors are orders of magnitude larger.
    assert abs(float(loss) - float(ref)) <= 5e-3 * (abs(float(ref)) + 1e-2), (
        f"mismatch: pallas={float(loss)} ref={float(ref)}")
    print("KERNEL_OK")
</pallas_src>

<mosaic_0001>
module attributes {stable_mosaic.version = 11 : i64} {
  func.func @_gdp_kernel(%arg0: i32, %arg1: i32, %arg2: i32, %arg3: memref<1x7x256xf32, #tpu.memory_space<vmem>>, %arg4: memref<1x1x256xi32, #tpu.memory_space<vmem>>, %arg5: memref<1x1x30x1xf32, #tpu.memory_space<vmem>>, %arg6: memref<1x1x30x1xf32, #tpu.memory_space<vmem>>) attributes {dimension_semantics = [#tpu.dimension_semantics<parallel>, #tpu.dimension_semantics<parallel>, #tpu.dimension_semantics<arbitrary>], iteration_bounds = array<i64: 1, 2, 1>, scalar_prefetch = 0 : i64, scratch_operands = 0 : i64, tpu.core_type = #tpu.core_type<tc>, window_params = [{transform_indices = @transform_0, window_bounds = array<i64: 1, 7, 256>}, {transform_indices = @transform_1, window_bounds = array<i64: 1, 1, 256>}, {transform_indices = @transform_2, window_bounds = array<i64: 1, 1, 30, 1>}, {transform_indices = @transform_3, window_bounds = array<i64: 1, 1, 30, 1>}]} {
    %c0_i32 = arith.constant 0 : i32
    %0 = arith.cmpi eq, %arg2, %c0_i32 : i32
    %1 = arith.extui %0 : i1 to i32
    %c0_i32_0 = arith.constant 0 : i32
    %2 = arith.cmpi ne, %1, %c0_i32_0 : i32
    scf.if %2 {
      %cst_36 = arith.constant 0.000000e+00 : f32
      %81 = vector.broadcast %cst_36 : f32 to vector<1x1x30x1xf32>
      %c0_37 = arith.constant 0 : index
      %c0_38 = arith.constant 0 : index
      %c0_39 = arith.constant 0 : index
      %c0_40 = arith.constant 0 : index
      %82 = vector.load %arg5[%c0_37, %c0_38, %c0_39, %c0_40] : memref<1x1x30x1xf32, #tpu.memory_space<vmem>>, vector<1x1x30x1xf32>
      tpu.vector_store %arg5[%c0_37, %c0_38, %c0_39, %c0_40], %81 {strides = array<i32>} : memref<1x1x30x1xf32, #tpu.memory_space<vmem>>, vector<1x1x30x1xf32>,
      %cst_41 = arith.constant 0.000000e+00 : f32
      %83 = vector.broadcast %cst_41 : f32 to vector<1x1x30x1xf32>
      %c0_42 = arith.constant 0 : index
      %c0_43 = arith.constant 0 : index
      %c0_44 = arith.constant 0 : index
      %c0_45 = arith.constant 0 : index
      %84 = vector.load %arg6[%c0_42, %c0_43, %c0_44, %c0_45] : memref<1x1x30x1xf32, #tpu.memory_space<vmem>>, vector<1x1x30x1xf32>
      tpu.vector_store %arg6[%c0_42, %c0_43, %c0_44, %c0_45], %83 {strides = array<i32>} : memref<1x1x30x1xf32, #tpu.memory_space<vmem>>, vector<1x1x30x1xf32>,
    } else {
    }
    %c0 = arith.constant 0 : index
    %c0_1 = arith.constant 0 : index
    %c0_2 = arith.constant 0 : index
    %3 = vector.load %arg3[%c0, %c0_1, %c0_2] : memref<1x7x256xf32, #tpu.memory_space<vmem>>, vector<1x7x256xf32>
    %4 = vector.shape_cast %3 : vector<1x7x256xf32> to vector<7x256xf32>
    %c0_3 = arith.constant 0 : index
    %c0_4 = arith.constant 0 : index
    %c0_5 = arith.constant 0 : index
    %5 = vector.load %arg4[%c0_3, %c0_4, %c0_5] : memref<1x1x256xi32, #tpu.memory_space<vmem>>, vector<1x1x256xi32>
    %6 = vector.shape_cast %5 : vector<1x1x256xi32> to vector<1x256xi32>
    %c-1_i32 = arith.constant -1 : i32
    %7 = vector.broadcast %c-1_i32 : i32 to vector<1x256xi32>
    %8 = arith.cmpi ne, %6, %7 : vector<1x256xi32>
    %cst = arith.constant dense<0xFF800000> : vector<256xf32>
    %9 = vector.multi_reduction <maximumf>, %4, %cst [0] : vector<7x256xf32> to vector<256xf32>
    %10 = vector.shape_cast %9 : vector<256xf32> to vector<1x256xf32>
    %11 = vector.broadcast %10 : vector<1x256xf32> to vector<7x256xf32>
    %12 = arith.subf %4, %11 : vector<7x256xf32>
    %13 = math.exp %12 : vector<7x256xf32>
    %cst_6 = arith.constant dense<0.000000e+00> : vector<256xf32>
    %14 = vector.multi_reduction <add>, %13, %cst_6 [0] : vector<7x256xf32> to vector<256xf32>
    %15 = vector.shape_cast %14 : vector<256xf32> to vector<1x256xf32>
    %16 = tpu.iota {dimensions = array<i32: 0>} : vector<7x256xi32>
    %17 = vector.broadcast %6 : vector<1x256xi32> to vector<7x256xi32>
    %18 = arith.cmpi eq, %16, %17 : vector<7x256xi32>
    %cst_7 = arith.constant 0.000000e+00 : f32
    %19 = vector.broadcast %cst_7 : f32 to vector<7x256xf32>
    %20 = arith.select %18, %12, %19 : vector<7x256xi1>, vector<7x256xf32>
    %cst_8 = arith.constant dense<0.000000e+00> : vector<256xf32>
    %21 = vector.multi_reduction <add>, %20, %cst_8 [0] : vector<7x256xf32> to vector<256xf32>
    %22 = vector.shape_cast %21 : vector<256xf32> to vector<1x256xf32>
    %23 = math.exp %22 : vector<1x256xf32>
    %24 = tpu.reciprocal %15 {approx = true} : vector<1x256xf32> -> vector<1x256xf32>
    %25 = arith.mulf %23, %24 : vector<1x256xf32>
    %cst_9 = arith.constant 1.000000e+00 : f32
    %26 = vector.broadcast %cst_9 : f32 to vector<1x256xf32>
    %27 = arith.subf %25, %26 : vector<1x256xf32>
    %28 = math.absf %27 : vector<1x256xf32>
    %cst_10 = arith.constant -1.000000e+00 : f32
    %29 = vector.broadcast %cst_10 : f32 to vector<1x256xf32>
    %30 = arith.select %8, %28, %29 : vector<1x256xi1>, vector<1x256xf32>
    %31 = math.log %15 : vector<1x256xf32>
    %32 = arith.subf %31, %22 : vector<1x256xf32>
    %cst_11 = arith.constant 3.000000e+01 : f32
    %33 = vector.broadcast %cst_11 : f32 to vector<1x256xf32>
    %34 = arith.mulf %30, %33 : vector<1x256xf32>
    %35 = math.floor %34 : vector<1x256xf32>
    %cst_12 = arith.constant 2.900000e+01 : f32
    %36 = vector.broadcast %cst_12 : f32 to vector<1x256xf32>
    %37 = arith.minimumf %35, %36 : vector<1x256xf32>
    %38 = arith.fptosi %37 : vector<1x256xf32> to vector<1x256xi32>
    %39 = math.ceil %34 : vector<1x256xf32>
    %cst_13 = arith.constant 1.000000e+00 : f32
    %40 = vector.broadcast %cst_13 : f32 to vector<1x256xf32>
    %41 = arith.subf %39, %40 : vector<1x256xf32>
    %cst_14 = arith.constant 2.900000e+01 : f32
    %42 = vector.broadcast %cst_14 : f32 to vector<1x256xf32>
    %43 = arith.minimumf %41, %42 : vector<1x256xf32>
    %44 = arith.fptosi %43 : vector<1x256xf32> to vector<1x256xi32>
    %45 = tpu.iota {dimensions = array<i32: 0>} : vector<30x256xi32>
    %46 = vector.broadcast %38 : vector<1x256xi32> to vector<30x256xi32>
    %47 = arith.cmpi eq, %45, %46 : vector<30x256xi32>
    %48 = arith.extui %47 : vector<30x256xi1> to vector<30x256xi32>
    %49 = arith.sitofp %48 : vector<30x256xi32> to vector<30x256xf32>
    %50 = vector.broadcast %44 : vector<1x256xi32> to vector<30x256xi32>
    %51 = arith.cmpi eq, %45, %50 : vector<30x256xi32>
    %52 = arith.extui %51 : vector<30x256xi1> to vector<30x256xi32>
    %53 = arith.sitofp %52 : vector<30x256xi32> to vector<30x256xf32>
    %54 = tpu.iota {dimensions = array<i32: 0>} : vector<8x256xi32>
    %c0_i32_15 = arith.constant 0 : i32
    %55 = vector.broadcast %c0_i32_15 : i32 to vector<8x256xi32>
    %56 = arith.cmpi eq, %54, %55 : vector<8x256xi32>
    %c1_i32 = arith.constant 1 : i32
    %57 = vector.broadcast %c1_i32 : i32 to vector<8x256xi32>
    %58 = arith.cmpi eq, %54, %57 : vector<8x256xi32>
    %cst_16 = arith.constant 0.000000e+00 : f32
    %59 = vector.shape_cast %32 : vector<1x256xf32> to vector<1x256xf32>
    %60 = vector.broadcast %59 : vector<1x256xf32> to vector<8x256xf32>
    %61 = vector.broadcast %cst_16 : f32 to vector<8x256xf32>
    %62 = arith.select %58, %60, %61 : vector<8x256xi1>, vector<8x256xf32>
    %cst_17 = arith.constant 1.000000e+00 : f32
    %63 = vector.broadcast %cst_17 : f32 to vector<8x256xf32>
    %64 = arith.select %56, %63, %62 : vector<8x256xi1>, vector<8x256xf32>
    %cst_18 = arith.constant dense<0.000000e+00> : vector<30x8xf32>
    %65 = tpu.matmul %49, %64, %cst_18 {dimension_numbers = #tpu.dot_dimension_numbers<[1], [1], [0], [0], [0, 0, 1, 0], [], []>} : vector<30x256xf32>, vector<8x256xf32>, vector<30x8xf32> -> vector<30x8xf32>
    %cst_19 = arith.constant dense<0.000000e+00> : vector<30x8xf32>
    %66 = tpu.matmul %53, %64, %cst_19 {dimension_numbers = #tpu.dot_dimension_numbers<[1], [1], [0], [0], [0, 0, 1, 0], [], []>} : vector<30x256xf32>, vector<8x256xf32>, vector<30x8xf32> -> vector<30x8xf32>
    %c0_20 = arith.constant 0 : index
    %c0_21 = arith.constant 0 : index
    %c0_22 = arith.constant 0 : index
    %c0_23 = arith.constant 0 : index
    %67 = vector.load %arg5[%c0_20, %c0_21, %c0_22, %c0_23] : memref<1x1x30x1xf32, #tpu.memory_space<vmem>>, vector<1x1x30x1xf32>
    %68 = vector.shape_cast %67 : vector<1x1x30x1xf32> to vector<30x1xf32>
    %69 = vector.extract_strided_slice %65 {offsets = [0, 0], sizes = [30, 1], strides = [1, 1]} : vector<30x8xf32> to vector<30x1xf32>
    %70 = arith.addf %68, %69 : vector<30x1xf32>
    %c0_24 = arith.constant 0 : index
    %c0_25 = arith.constant 0 : index
    %c0_26 = arith.constant 0 : index
    %c0_27 = arith.constant 0 : index
    %71 = vector.load %arg5[%c0_24, %c0_25, %c0_26, %c0_27] : memref<1x1x30x1xf32, #tpu.memory_space<vmem>>, vector<1x1x30x1xf32>
    %72 = vector.shape_cast %71 : vector<1x1x30x1xf32> to vector<30x1xf32>
    %73 = vector.shape_cast %70 : vector<30x1xf32> to vector<1x1x30x1xf32>
    tpu.vector_store %arg5[%c0_24, %c0_25, %c0_26, %c0_27], %73 {strides = array<i32>} : memref<1x1x30x1xf32, #tpu.memory_space<vmem>>, vector<1x1x30x1xf32>,
    %c0_28 = arith.constant 0 : index
    %c0_29 = arith.constant 0 : index
    %c0_30 = arith.constant 0 : index
    %c0_31 = arith.constant 0 : index
    %74 = vector.load %arg6[%c0_28, %c0_29, %c0_30, %c0_31] : memref<1x1x30x1xf32, #tpu.memory_space<vmem>>, vector<1x1x30x1xf32>
    %75 = vector.shape_cast %74 : vector<1x1x30x1xf32> to vector<30x1xf32>
    %76 = vector.extract_strided_slice %66 {offsets = [0, 1], sizes = [30, 1], strides = [1, 1]} : vector<30x8xf32> to vector<30x1xf32>
    %77 = arith.addf %75, %76 : vector<30x1xf32>
    %c0_32 = arith.constant 0 : index
    %c0_33 = arith.constant 0 : index
    %c0_34 = arith.constant 0 : index
    %c0_35 = arith.constant 0 : index
    %78 = vector.load %arg6[%c0_32, %c0_33, %c0_34, %c0_35] : memref<1x1x30x1xf32, #tpu.memory_space<vmem>>, vector<1x1x30x1xf32>
    %79 = vector.shape_cast %78 : vector<1x1x30x1xf32> to vector<30x1xf32>
    %80 = vector.shape_cast %77 : vector<30x1xf32> to vector<1x1x30x1xf32>
    tpu.vector_store %arg6[%c0_32, %c0_33, %c0_34, %c0_35], %80 {strides = array<i32>} : memref<1x1x30x1xf32, #tpu.memory_space<vmem>>, vector<1x1x30x1xf32>,
    return
  }
  func.func @transform_0(%arg0: i32, %arg1: i32, %arg2: i32) -> (i32, i32, i32) {
    %c1_i32 = arith.constant 1 : i32
    %0 = arith.muli %arg0, %c1_i32 : i32
    %1 = arith.addi %0, %arg2 : i32
    %c0_i32 = arith.constant 0 : i32
    %c0_i32_0 = arith.constant 0 : i32
    return %arg1, %c0_i32, %1 : i32, i32, i32
  }
  func.func @transform_1(%arg0: i32, %arg1: i32, %arg2: i32) -> (i32, i32, i32) {
    %c1_i32 = arith.constant 1 : i32
    %0 = arith.muli %arg0, %c1_i32 : i32
    %1 = arith.addi %0, %arg2 : i32
    %c0_i32 = arith.constant 0 : i32
    %c0_i32_0 = arith.constant 0 : i32
    return %arg1, %c0_i32, %1 : i32, i32, i32
  }
  func.func @transform_2(%arg0: i32, %arg1: i32, %arg2: i32) -> (i32, i32, i32, i32) {
    %c0_i32 = arith.constant 0 : i32
    %c0_i32_0 = arith.constant 0 : i32
    %c0_i32_1 = arith.constant 0 : i32
    return %arg0, %arg1, %c0_i32, %c0_i32_0 : i32, i32, i32, i32
  }
  func.func @transform_3(%arg0: i32, %arg1: i32, %arg2: i32) -> (i32, i32, i32, i32) {
    %c0_i32 = arith.constant 0 : i32
    %c0_i32_0 = arith.constant 0 : i32
    %c0_i32_1 = arith.constant 0 : i32
    return %arg0, %arg1, %c0_i32, %c0_i32_0 : i32, i32, i32, i32
  }
}

</mosaic_0001>

<llo_original>
// kernel: tpu_custom_call.1
$region0: #{tpu_custom_call.1}
  #allocation0 [shape = 'u32[]', space=smem, size = 0x4, offset = 0x4, fixed_abs, tag = 'smem constant byte address 0x4 - core index']
  #allocation1 [shape = 'u32[144,128]{1,0:T(1,128)}', space=vmem, size = 0x12000, scoped, tag = 'internal scratch']
  %s0 = inlined_call_operand.vmem [shape: f32[2,7,256], index: 0, kind: input, shape index: {}]
  %s1 = inlined_call_operand.vmem [shape: s32[2,1,256], index: 1, kind: input, shape index: {}]
  %s2 = inlined_call_operand.vmem [shape: f32[1,2,30,1], index: 2, kind: output, shape index: {0}]
  %s3 = inlined_call_operand.vmem [shape: f32[1,2,30,1], index: 3, kind: output, shape index: {1}]
  %4 = xla_tuple %s2, %s3
  %s5 = sld [smem:[#allocation0]]
  $region53: #{tpu_custom_call.1} parent=0
    _
  %s7 = ssub.s32 1, %s5
  %s8 = scalar_select 0, %s7, %s5
  loop: start=0, step=1, limit=4
  $region2: #{tpu_custom_call.1} parent=0 // loop_pre_header
    _
  $region3: #{tpu_custom_call.1} parent=0 // loop_header
    %s10 = sphi 0, %s14
    %p11 = scmp.ge.s32.totalorder %s10, 4
    %s17 = sphi 0, %s36
    %s18 = sphi 0, %s32
    %s19 = sphi 0, %s28
    %s20 = sphi 0, %s17
    %s21 = sphi 0, %s18
    %s22 = sphi 0, %s19
    %s23 = sphi 0, %s20
    %s24 = sphi 0, %s21
    %s25 = sphi 0, %s22
    %s43 = sphi 0, %s45
    %s46 = sphi 0, %s43
    %s47 = sphi 0, %s46
    %s63 = sphi 0, %s47
    %s73 = sphi 0, %s75
    %s76 = sphi 0, %s73
    %s77 = sphi 0, %s76
    %s93 = sphi 0, %s77
    %s101 = sphi 0, %s103
    %s104 = sphi 0, %s101
    %s105 = sphi 0, %s104
    %s121 = sphi 0, %s105
    %s129 = sphi 0, %s131
    %s132 = sphi 0, %s129
    %s133 = sphi 0, %s132
    %s149 = sphi 0, %s133
  $region4: #{tpu_custom_call.1} parent=0 // loop_header_branch
    %13 = sbr.rel (%p11) target = $region8
  $region5: #{tpu_custom_call.1} parent=0 // loop_body
    %s15 = ssub.s32 %s10, 1
    %s16 = ssub.s32 %s10, 2
    %s26 = sadd.s32 1, %s19
    %p27 = scmp.ge.s32.totalorder %s26, 1
    %s28 = scalar_select %p27, 0, %s26
    %s29 = sadd.s32 1, %s18
    %s30 = scalar_select %p27, %s29, %s18
    %p31 = scmp.ge.s32.totalorder %s30, 2
    %s32 = scalar_select %p31, 0, %s30
    %s33 = sadd.s32 1, %s17
    %s34 = scalar_select %p31, %s33, %s17
    %p35 = scmp.ge.s32.totalorder %s34, 1
    %s36 = scalar_select %p35, 0, %s34
    %s37 = sadd.s32 %s17, %s19
    %s38 = sadd.s32 %s36, %s28
    %s39 = ssub.s32 %s18, %s32
    %s40 = ssub.s32 %s37, %s38
    %s41 = sor.u32 %s39, %s40
    %p42 = scmp.eq.s32.totalorder %s41, 0
    %s44 = sadd.s32 %s43, 1
    %s45 = scalar_select %p42, %s43, %s44
    %p48 = pneg %p42
    %p49 = scmp.eq.s32.totalorder %s10, 1
    %p50 = por %p48, %p49
    %p51 = scmp.ne.s32.totalorder %s43, %s46
    %p52 = scmp.eq.s32.totalorder %s10, 0
    %p53 = por %p51, %p52
    %p54 = scmp.ne.s32.totalorder %s43, %s46
    %p55 = scmp.eq.s32.totalorder %s15, 1
    %p56 = por %p54, %p55
    %p57 = scmp.ne.s32.totalorder %s46, %s47
    %p58 = scmp.eq.s32.totalorder %s15, 0
    %p59 = por %p57, %p58
    %p60 = scmp.ne.s32.totalorder %s46, %s47
    %p61 = scmp.eq.s32.totalorder %s16, 1
    %p62 = por %p60, %p61
    %p64 = scmp.ne.s32.totalorder %s47, %s63
    %p65 = scmp.eq.s32.totalorder %s16, 0
    %p66 = por %p64, %p65
    %s67 = sadd.s32 %s17, %s19
    %s68 = sadd.s32 %s36, %s28
    %s69 = ssub.s32 %s18, %s32
    %s70 = ssub.s32 %s67, %s68
    %s71 = sor.u32 %s69, %s70
    %p72 = scmp.eq.s32.totalorder %s71, 0
    %s74 = sadd.s32 %s73, 1
    %s75 = scalar_select %p72, %s73, %s74
    %p78 = pneg %p72
    %p79 = scmp.eq.s32.totalorder %s10, 1
    %p80 = por %p78, %p79
    %p81 = scmp.ne.s32.totalorder %s73, %s76
    %p82 = scmp.eq.s32.totalorder %s10, 0
    %p83 = por %p81, %p82
    %p84 = scmp.ne.s32.totalorder %s73, %s76
    %p85 = scmp.eq.s32.totalorder %s15, 1
    %p86 = por %p84, %p85
    %p87 = scmp.ne.s32.totalorder %s76, %s77
    %p88 = scmp.eq.s32.totalorder %s15, 0
    %p89 = por %p87, %p88
    %p90 = scmp.ne.s32.totalorder %s76, %s77
    %p91 = scmp.eq.s32.totalorder %s16, 1
    %p92 = por %p90, %p91
    %p94 = scmp.ne.s32.totalorder %s77, %s93
    %p95 = scmp.eq.s32.totalorder %s16, 0
    %p96 = por %p94, %p95
    %s97 = ssub.s32 %s17, %s36
    %s98 = ssub.s32 %s18, %s32
    %s99 = sor.u32 %s97, %s98
    %p100 = scmp.eq.s32.totalorder %s99, 0
    %s102 = sadd.s32 %s101, 1
    %s103 = scalar_select %p100, %s101, %s102
    %p106 = pneg %p100
    %p107 = scmp.eq.s32.totalorder %s10, 1
    %p108 = por %p106, %p107
    %p109 = scmp.ne.s32.totalorder %s101, %s104
    %p110 = scmp.eq.s32.totalorder %s10, 0
    %p111 = por %p109, %p110
    %p112 = scmp.ne.s32.totalorder %s101, %s104
    %p113 = scmp.eq.s32.totalorder %s15, 1
    %p114 = por %p112, %p113
    %p115 = scmp.ne.s32.totalorder %s104, %s105
    %p116 = scmp.eq.s32.totalorder %s15, 0
    %p117 = por %p115, %p116
    %p118 = scmp.ne.s32.totalorder %s104, %s105
    %p119 = scmp.eq.s32.totalorder %s16, 1
    %p120 = por %p118, %p119
    %p122 = scmp.ne.s32.totalorder %s105, %s121
    %p123 = scmp.eq.s32.totalorder %s16, 0
    %p124 = por %p122, %p123
    %s125 = ssub.s32 %s17, %s36
    %s126 = ssub.s32 %s18, %s32
    %s127 = sor.u32 %s125, %s126
    %p128 = scmp.eq.s32.totalorder %s127, 0
    %s130 = sadd.s32 %s129, 1
    %s131 = scalar_select %p128, %s129, %s130
    %p134 = pneg %p128
    %p135 = scmp.eq.s32.totalorder %s10, 1
    %p136 = por %p134, %p135
    %p137 = scmp.ne.s32.totalorder %s129, %s132
    %p138 = scmp.eq.s32.totalorder %s10, 0
    %p139 = por %p137, %p138
    %p140 = scmp.ne.s32.totalorder %s129, %s132
    %p141 = scmp.eq.s32.totalorder %s15, 1
    %p142 = por %p140, %p141
    %p143 = scmp.ne.s32.totalorder %s132, %s133
    %p144 = scmp.eq.s32.totalorder %s15, 0
    %p145 = por %p143, %p144
    %p146 = scmp.ne.s32.totalorder %s132, %s133
    %p147 = scmp.eq.s32.totalorder %s16, 1
    %p148 = por %p146, %p147
    %p150 = scmp.ne.s32.totalorder %s133, %s149
    %p151 = scmp.eq.s32.totalorder %s16, 0
    %p152 = por %p150, %p151
    %p153 = scmp.le.s32.totalorder 1, %s10
    %p154 = scmp.lt.s32.totalorder %s10, 3
    %p155 = pnand %p153, %p154
    %p156 = pneg %p155
    // Predicated region
    $region9: #{tpu_custom_call.1} parent=5 // pred_check
      _
    $region10: #{tpu_custom_call.1} parent=5 // pred_check_branch
      %158 = sbr.rel (%p155) target = $region12
    $region11: #{tpu_custom_call.1} parent=5 // pred_region
      %s159 = ssub.s32 %s10, 1
    $region12: #{tpu_custom_call.1} parent=5 // pred_fallthru
      _
    %p160 = scmp.lt.s32.totalorder %s10, 2
    // Predicated region
    $region13: #{tpu_custom_call.1} parent=5 // pred_check
      %p161 = pneg %p160
    $region14: #{tpu_custom_call.1} parent=5 // pred_check_branch
      %163 = sbr.rel (%p161) target = $region16
    $region15: #{tpu_custom_call.1} parent=5 // pred_region
      // Predicated region
      $region17: #{tpu_custom_call.1} parent=15 // pred_check
        %p164 = pneg %p53
      $region18: #{tpu_custom_call.1} parent=15 // pred_check_branch
        %166 = sbr.rel (%p164) target = $region20
      $region19: #{tpu_custom_call.1} parent=15 // pred_region
        %s167 = sadd.s32 %s17, %s19
        %s168 = smul.u32 2, %s167
        %p169 = scmp.lt.s32.totalorder %s18, 1
        %s170 = scalar_select %p169, %s18, 1
        %p171 = scmp.lt.s32.totalorder %s168, 1
        %s172 = scalar_select %p171, %s168, 1
        %s173 = smul.addr %s170, 2
        %s174 = sadd.s32 %s172, %s173
        %s175 = smul.addr %s174, 8
        %s176 = scalar_lea.vmem %s0, %s175
        %s177 = sadd.s32 %s17, %s19
        %s178 = smul.u32 2, %s177
      $region20: #{tpu_custom_call.1} parent=15 // pred_fallthru
        _
      // Predicated region
      $region21: #{tpu_custom_call.1} parent=15 // pred_check
        %p179 = pneg %p83
      $region22: #{tpu_custom_call.1} parent=15 // pred_check_branch
        %181 = sbr.rel (%p179) target = $region24
      $region23: #{tpu_custom_call.1} parent=15 // pred_region
        %s182 = sadd.s32 %s17, %s19
        %s183 = smul.u32 2, %s182
        %p184 = scmp.lt.s32.totalorder %s18, 1
        %s185 = scalar_select %p184, %s18, 1
        %p186 = scmp.lt.s32.totalorder %s183, 1
        %s187 = scalar_select %p186, %s183, 1
        %s188 = smul.addr %s185, 2
        %s189 = sadd.s32 %s187, %s188
        %s190 = scalar_lea.vmem %s1, %s189
        %s191 = sadd.s32 %s17, %s19
        %s192 = smul.u32 2, %s191
      $region24: #{tpu_custom_call.1} parent=15 // pred_fallthru
        _
    $region16: #{tpu_custom_call.1} parent=5 // pred_fallthru
      _
    %p193 = scmp.le.s32.totalorder 1, %s10
    %p194 = scmp.lt.s32.totalorder %s10, 3
    %p195 = pnand %p193, %p194
    %p196 = pneg %p195
    // Predicated region
    $region25: #{tpu_custom_call.1} parent=5 // pred_check
      _
    $region26: #{tpu_custom_call.1} parent=5 // pred_check_branch
      %198 = sbr.rel (%p195) target = $region28
    $region27: #{tpu_custom_call.1} parent=5 // pred_region
      %s199 = ssub.s32 %s10, 1
      %s200 = sadd.s32 %s20, %s22
      %s201 = smul.u32 2, %s200
      %p202 = scmp.lt.s32.totalorder %s21, 1
      %s203 = scalar_select %p202, %s21, 1
      %p204 = scmp.lt.s32.totalorder %s201, 1
      %s205 = scalar_select %p204, %s201, 1
      %s206 = smul.addr %s203, 2
      %s207 = sadd.s32 %s205, %s206
      %s208 = smul.addr %s207, 8
      %s209 = scalar_lea.vmem %s0, %s208
      %p210 = pneg %p59
      %p211 = pneg %p56
      %s212 = sadd.s32 %s20, %s22
      %s213 = smul.u32 2, %s212
      %p214 = scmp.lt.s32.totalorder %s21, 1
      %s215 = scalar_select %p214, %s21, 1
      %p216 = scmp.lt.s32.totalorder %s213, 1
      %s217 = scalar_select %p216, %s213, 1
      %s218 = smul.addr %s215, 2
      %s219 = sadd.s32 %s217, %s218
      %s220 = scalar_lea.vmem %s1, %s219
      %p221 = pneg %p89
      %p222 = pneg %p86
      %p223 = pneg %p117
      %p224 = pneg %p114
      %p225 = scmp.lt.s32.totalorder %s20, 0
      %s226 = scalar_select %p225, %s20, 0
      %p227 = scmp.lt.s32.totalorder %s21, 1
      %s228 = scalar_select %p227, %s21, 1
      %s229 = smul.addr %s228, 4
      %s230 = smul.addr %s226, 8
      %s231 = sadd.s32 %s229, %s230
      %s232 = smul.addr %s231, 8
      %s233 = scalar_lea.vmem %s2, %s232
      %p234 = pneg %p145
      %p235 = pneg %p142
      %p236 = scmp.lt.s32.totalorder %s20, 0
      %s237 = scalar_select %p236, %s20, 0
      %p238 = scmp.lt.s32.totalorder %s21, 1
      %s239 = scalar_select %p238, %s21, 1
      %s240 = smul.addr %s239, 4
      %s241 = smul.addr %s237, 8
      %s242 = sadd.s32 %s240, %s241
      %s243 = smul.addr %s242, 8
      %s244 = scalar_lea.vmem %s3, %s243
      %s245 = sadd.s32 %s20, %s22
      %s246 = smul.u32 2, %s245
      %p247 = scmp.lt.s32.totalorder %s21, 1
      %s248 = scalar_select %p247, %s21, 1
      %p249 = scmp.lt.s32.totalorder %s246, 1
      %s250 = scalar_select %p249, %s246, 1
      %s251 = smul.addr %s248, 2
      %s252 = sadd.s32 %s250, %s251
      %s253 = smul.addr %s252, 8
      %s254 = scalar_lea.vmem %s0, %s253
      %s255 = sadd.s32 %s20, %s22
      %s256 = smul.u32 2, %s255
      %s257 = sadd.s32 %s20, %s22
      %s258 = smul.u32 2, %s257
      %p259 = scmp.lt.s32.totalorder %s21, 1
      %s260 = scalar_select %p259, %s21, 1
      %p261 = scmp.lt.s32.totalorder %s258, 1
      %s262 = scalar_select %p261, %s258, 1
      %s263 = smul.addr %s260, 2
      %s264 = sadd.s32 %s262, %s263
      %s265 = scalar_lea.vmem %s1, %s264
      %s266 = sadd.s32 %s20, %s22
      %s267 = smul.u32 2, %s266
      %p268 = scmp.lt.s32.totalorder %s20, 0
      %s269 = scalar_select %p268, %s20, 0
      %p270 = scmp.lt.s32.totalorder %s21, 1
      %s271 = scalar_select %p270, %s21, 1
      %s272 = smul.addr %s271, 4
      %s273 = smul.addr %s269, 8
      %s274 = sadd.s32 %s272, %s273
      %s275 = smul.addr %s274, 8
      %s276 = scalar_lea.vmem %s2, %s275
      %p277 = scmp.lt.s32.totalorder %s20, 0
      %s278 = scalar_select %p277, %s20, 0
      %p279 = scmp.lt.s32.totalorder %s21, 1
      %s280 = scalar_select %p279, %s21, 1
      %s281 = smul.addr %s280, 4
      %s282 = smul.addr %s278, 8
      %s283 = sadd.s32 %s281, %s282
      %s284 = smul.addr %s283, 8
      %s285 = scalar_lea.vmem %s3, %s284
      %p286 = scmp.eq.s32.totalorder %s22, 0
      // Predicated region
      $region29: #{tpu_custom_call.1} parent=27 // pred_check
        %p287 = pneg %p286
      $region30: #{tpu_custom_call.1} parent=27 // pred_check_branch
        %289 = sbr.rel (%p287) target = $region32
      $region31: #{tpu_custom_call.1} parent=27 // pred_region
        %vm290 = vcmask 7168
        %291 = vst.msk [vmem:[%s276] sm:$0xff] %vm290, 0.0
        %292 = vst.msk [vmem:[%s276 + $0x8] sm:$0xff] %vm290, 0.0
        %293 = vst.msk [vmem:[%s276 + $0x10] sm:$0xff] %vm290, 0.0
        %vm294 = vcmask 5120
        %295 = vst.msk [vmem:[%s276 + $0x18] sm:$0x3f] %vm294, 0.0
        %296 = vst.msk [vmem:[%s285] sm:$0xff] %vm290, 0.0
        %297 = vst.msk [vmem:[%s285 + $0x8] sm:$0xff] %vm290, 0.0
        %298 = vst.msk [vmem:[%s285 + $0x10] sm:$0xff] %vm290, 0.0
        %299 = vst.msk [vmem:[%s285 + $0x18] sm:$0x3f] %vm294, 0.0
      $region32: #{tpu_custom_call.1} parent=27 // pred_fallthru
        _
      %v300 = vld [vmem:[%s254] sm:$0x7f]
      %v301 = vld [vmem:[%s254 + $0x8] sm:$0x7f]
      %v302 = vld [vmem:[%s265] sm:$0x3]
      %vm303 = vcmp.ne.s32.totalorder %v302, 4294967295
      %vm304 = vcmask 1046528
      %v305 = vsel %vm304, %v300, -inf
      %v306 = vrot.slane %v305, 4
      %v307 = vmax.f32 %v305, %v306
      %v308 = vrot.slane %v307, 2
      %v309 = vmax.f32 %v307, %v308
      %v310 = vrot.slane %v309, 1
      %v311 = vmax.f32 %v309, %v310
      %v312 = vsel %vm304, %v301, -inf
      %v313 = vrot.slane %v312, 4
      %v314 = vmax.f32 %v312, %v313
      %v315 = vrot.slane %v314, 2
      %v316 = vmax.f32 %v314, %v315
      %v317 = vrot.slane %v316, 1
      %v318 = vmax.f32 %v316, %v317
      %v319 = vsub.f32 %v300, %v311
      %v320 = vsub.f32 %v301, %v318
      %v321 = vmul.f32 %v319, 1.442695
      %v322 = vpow.pop %v321
      %v323 = vmul.f32 %v320, 1.442695
      %v324 = vpow.pop %v323
      %v325 = vsel %vm304, %v322, 0.0
      %v326 = vrot.slane %v325, 4
      %v327 = vadd.f32 %v325, %v326
      %v328 = vrot.slane %v327, 2
      %v329 = vadd.f32 %v327, %v328
      %v330 = vrot.slane %v329, 1
      %v331 = vadd.f32 %v329, %v330
      %v332 = vsel %vm304, %v324, 0.0
      %v333 = vrot.slane %v332, 4
      %v334 = vadd.f32 %v332, %v333
      %v335 = vrot.slane %v334, 2
      %v336 = vadd.f32 %v334, %v335
      %v337 = vrot.slane %v336, 1
      %v338 = vadd.f32 %v336, %v337
      %v339 = vlaneseq
      %v340 = vshrl.u32 %v339, 7
      %v341 = vlaneseq
      %v342 = vshrl.u32 %v341, 7
      %v343 = vsub.s32 0, %v342
      %v344 = vrot.slane %v302, %v343
      %v345 = vlaneseq
      %v346 = vshrl.u32 %v345, 7
      %v347 = vsub.s32 1, %v346
      %v348 = vrot.slane %v302, %v347
      %vm349 = vcmp.eq.s32.totalorder %v340, %v344
      %vm350 = vcmp.eq.s32.totalorder %v340, %v348
      %v351 = vsel %vm349, %v319, 0.0
      %v352 = vsel %vm350, %v320, 0.0
      %v353 = vsel %vm304, %v351, 0.0
      %v354 = vrot.slane %v353, 4
      %v355 = vadd.f32 %v353, %v354
      %v356 = vrot.slane %v355, 2
      %v357 = vadd.f32 %v355, %v356
      %v358 = vrot.slane %v357, 1
      %v359 = vadd.f32 %v357, %v358
      %v360 = vsel %vm304, %v352, 0.0
      %v361 = vrot.slane %v360, 4
      %v362 = vadd.f32 %v360, %v361
      %v363 = vrot.slane %v362, 2
      %v364 = vadd.f32 %v362, %v363
      %v365 = vrot.slane %v364, 1
      %v366 = vadd.f32 %v364, %v365
      %v367 = vmul.f32 %v359, 1.442695
      %v368 = vpow.pop %v367
      %v369 = vmul.f32 %v366, 1.442695
      %v370 = vpow.pop %v369
      %v371 = vrcp.pop %v331
      %v372 = vrcp.pop %v338
      %v373 = vmul.f32 %v368, %v371
      %v374 = vmul.f32 %v370, %v372
      %v375 = vsub.f32 %v373, 1.0
      %v376 = vsub.f32 %v374, 1.0
      %v377 = vand.u32 2147483647, %v375
      %v378 = vand.u32 2147483647, %v376
      %v381 = vcombine.low %v377, %v378
      %v383 = vunpack.c.l.s4 1966171168
      %v384 = vunpack.c.0.s8 %v383
      %v385 = vlaneseq
      %v386 = vshrl.u32 %v385, 7
      %v387 = vsub.s32 %v384, %v386
      %v388 = vrot.slane %v381, %v387
      %v390 = vunpack.c.l.s4 1966171168
      %v391 = vunpack.c.0.s8 %v390
      %v392 = vlaneseq
      %v393 = vshrl.u32 %v392, 7
      %v394 = vsub.s32 %v391, %v393
      %v395 = vrot.slane %v388, %v394
      %v397 = vsel %vm303, %v395, -1.0
      %v398 = vlog2.pop %v331
      %v399 = vmul.f32 %v398, 0.6931472
      %v400 = vlog2.pop %v338
      %v401 = vmul.f32 %v400, 0.6931472
      %v402 = vsub.f32 %v399, %v359
      %v403 = vsub.f32 %v401, %v366
      %v404 = vmul.f32 %v397, 30.0
      %v405 = vfloor.f32 %v404
      %v406 = vmin.f32 %v405, 29.0
      %v407 = vcvt.f32.s32.to.zero.pseudo %v406
      %v408 = vceil.f32 %v404
      %v409 = vsub.f32 %v408, 1.0
      %v410 = vmin.f32 %v409, 29.0
      %v411 = vcvt.f32.s32.to.zero.pseudo %v410
      %v412 = vadd.s32 %v340, 8
      %v413 = vadd.s32 %v340, 16
      %v414 = vadd.s32 %v340, 24
      %v415 = vlaneseq
      %v416 = vshrl.u32 %v415, 7
      %v417 = vsub.s32 0, %v416
      %v418 = vrot.slane %v407, %v417
      %v419 = vlaneseq
      %v420 = vshrl.u32 %v419, 7
      %v421 = vsub.s32 1, %v420
      %v422 = vrot.slane %v407, %v421
      %vm423 = vcmp.eq.s32.totalorder %v340, %v418
      %vm424 = vcmp.eq.s32.totalorder %v340, %v422
      %vm425 = vcmp.eq.s32.totalorder %v412, %v418
      %vm426 = vcmp.eq.s32.totalorder %v412, %v422
      %vm427 = vcmp.eq.s32.totalorder %v413, %v418
      %vm428 = vcmp.eq.s32.totalorder %v413, %v422
      %vm429 = vcmp.eq.s32.totalorder %v414, %v418
      %vm430 = vcmp.eq.s32.totalorder %v414, %v422
      %v431 = vsel %vm423, 1, 0
      %v432 = vsel %vm424, 1, 0
      %v433 = vsel %vm425, 1, 0
      %v434 = vsel %vm426, 1, 0
      %v435 = vsel %vm427, 1, 0
      %v436 = vsel %vm428, 1, 0
      %v437 = vsel %vm429, 1, 0
      %v438 = vsel %vm430, 1, 0
      %v439 = vcvt.s32.f32 %v431
      %v440 = vcvt.s32.f32 %v432
      %v441 = vcvt.s32.f32 %v433
      %v442 = vcvt.s32.f32 %v434
      %v443 = vcvt.s32.f32 %v435
      %v444 = vcvt.s32.f32 %v436
      %v445 = vcvt.s32.f32 %v437
      %v446 = vcvt.s32.f32 %v438
      %v447 = vlaneseq
      %v448 = vshrl.u32 %v447, 7
      %v449 = vsub.s32 0, %v448
      %v450 = vrot.slane %v411, %v449
      %v451 = vlaneseq
      %v452 = vshrl.u32 %v451, 7
      %v453 = vsub.s32 1, %v452
      %v454 = vrot.slane %v411, %v453
      %vm455 = vcmp.eq.s32.totalorder %v340, %v450
      %vm456 = vcmp.eq.s32.totalorder %v340, %v454
      %vm457 = vcmp.eq.s32.totalorder %v412, %v450
      %vm458 = vcmp.eq.s32.totalorder %v412, %v454
      %vm459 = vcmp.eq.s32.totalorder %v413, %v450
      %vm460 = vcmp.eq.s32.totalorder %v413, %v454
      %vm461 = vcmp.eq.s32.totalorder %v414, %v450
      %vm462 = vcmp.eq.s32.totalorder %v414, %v454
      %v463 = vsel %vm455, 1, 0
      %v464 = vsel %vm456, 1, 0
      %v465 = vsel %vm457, 1, 0
      %v466 = vsel %vm458, 1, 0
      %v467 = vsel %vm459, 1, 0
      %v468 = vsel %vm460, 1, 0
      %v469 = vsel %vm461, 1, 0
      %v470 = vsel %vm462, 1, 0
      %v471 = vcvt.s32.f32 %v463
      %v472 = vcvt.s32.f32 %v464
      %v473 = vcvt.s32.f32 %v465
      %v474 = vcvt.s32.f32 %v466
      %v475 = vcvt.s32.f32 %v467
      %v476 = vcvt.s32.f32 %v468
      %v477 = vcvt.s32.f32 %v469
      %v478 = vcvt.s32.f32 %v470
      %vm479 = vcmp.eq.s32.totalorder %v340, 0
      %vm480 = vcmp.eq.s32.totalorder %v340, 1
      %v481 = vsel %vm480, %v402, 0.0
      %v482 = vsel %vm480, %v403, 0.0
      %v483 = vsel %vm479, 1.0, %v481
      %v484 = vsel %vm479, 1.0, %v482
      %485 = vmatprep.subr.mxu0 %v484
      %486 = vmatpush1.xpose.msra.mxu0 %v483
      %487 = vmatprep.subr.mxu0 0.0
      %488 = vmatpush1.xpose.msra.mxu0 0.0
      %489 = vmatprep.subr.mxu0 0.0
      %490 = vmatpush1.xpose.msra.mxu0 0.0
      %491 = vmatprep.subr.mxu0 0.0
      %492 = vmatpush1.xpose.msra.mxu0 0.0
      %493 = vmatprep.subr.mxu0 0.0
      %494 = vmatpush1.xpose.msra.mxu0 0.0
      %495 = vmatprep.subr.mxu0 0.0
      %496 = vmatpush1.xpose.msra.mxu0 0.0
      %497 = vmatprep.subr.mxu0 0.0
      %498 = vmatpush1.xpose.msra.mxu0 0.0
      %499 = vmatprep.subr.mxu0 0.0
      %500 = vmatpush1.xpose.msra.mxu0 0.0
      %501 = vmatprep.subr.mxu0 0.0
      %502 = vmatpush1.xpose.msra.mxu0 0.0
      %503 = vmatprep.subr.mxu0 0.0
      %504 = vmatpush1.xpose.msra.mxu0 0.0
      %505 = vmatprep.subr.mxu0 0.0
      %506 = vmatpush1.xpose.msra.mxu0 0.0
      %507 = vmatprep.subr.mxu0 0.0
      %508 = vmatpush1.xpose.msra.mxu0 0.0
      %509 = vmatprep.subr.mxu0 0.0
      %510 = vmatpush1.xpose.msra.mxu0 0.0
      %511 = vmatprep.subr.mxu0 0.0
      %512 = vmatpush1.xpose.msra.mxu0 0.0
      %513 = vmatprep.subr.mxu0 0.0
      %514 = vmatpush1.xpose.msra.mxu0 0.0
      %515 = vmatprep.subr.mxu0 0.0
      %516 = vmatpush1.xpose.msra.mxu0 0.0
      %517 = vmatprep.subr.mxu0 0.0
      %518 = vmatpush1.xpose.msra.mxu0 0.0
      %519 = vmatprep.subr.mxu0 0.0
      %520 = vmatpush1.xpose.msra.mxu0 0.0
      %521 = vmatprep.subr.mxu0 0.0
      %522 = vmatpush1.xpose.msra.mxu0 0.0
      %523 = vmatprep.subr.mxu0 0.0
      %524 = vmatpush1.xpose.msra.mxu0 0.0
      %525 = vmatprep.subr.mxu0 0.0
      %526 = vmatpush1.xpose.msra.mxu0 0.0
      %527 = vmatprep.subr.mxu0 0.0
      %528 = vmatpush1.xpose.msra.mxu0 0.0
      %529 = vmatprep.subr.mxu0 0.0
      %530 = vmatpush1.xpose.msra.mxu0 0.0
      %531 = vmatprep.subr.mxu0 0.0
      %532 = vmatpush1.xpose.msra.mxu0 0.0
      %533 = vmatprep.subr.mxu0 0.0
      %534 = vmatpush1.xpose.msra.mxu0 0.0
      %535 = vmatprep.subr.mxu0 0.0
      %536 = vmatpush1.xpose.msra.mxu0 0.0
      %537 = vmatprep.subr.mxu0 0.0
      %538 = vmatpush1.xpose.msra.mxu0 0.0
      %539 = vmatprep.subr.mxu0 0.0
      %540 = vmatpush1.xpose.msra.mxu0 0.0
      %541 = vmatprep.subr.mxu0 0.0
      %542 = vmatpush1.xpose.msra.mxu0 0.0
      %543 = vmatprep.subr.mxu0 0.0
      %544 = vmatpush1.xpose.msra.mxu0 0.0
      %545 = vmatprep.subr.mxu0 0.0
      %546 = vmatpush1.xpose.msra.mxu0 0.0
      %547 = vmatprep.subr.mxu0 0.0
      %548 = vmatpush1.xpose.msra.mxu0 0.0
      %549 = vmatprep.mubr.f32.mxu0 %v440
      %550 = vmatmul.mubr.f32.gmra.mrb[0].mxu0 %v439
      %v551 = vpop.f32.mrb[0].mxu0
      %v552 = vadd.f32 0.0, %v551
      %v553 = vpop.f32.mrb[0].mxu0
      %554 = vmatprep.mubr.f32.mxu0 %v442
      %555 = vmatmul.mubr.f32.gmra.mrb[0].mxu0 %v441
      %v556 = vpop.f32.mrb[0].mxu0
      %v557 = vadd.f32 0.0, %v556
      %v558 = vpop.f32.mrb[0].mxu0
      %559 = vmatprep.mubr.f32.mxu0 %v444
      %560 = vmatmul.mubr.f32.gmra.mrb[0].mxu0 %v443
      %v561 = vpop.f32.mrb[0].mxu0
      %v562 = vadd.f32 0.0, %v561
      %v563 = vpop.f32.mrb[0].mxu0
      %564 = vmatprep.mubr.f32.mxu0 %v446
      %565 = vmatmul.mubr.f32.gmra.mrb[0].mxu0 %v445
      %v566 = vpop.f32.mrb[0].mxu0
      %v567 = vadd.f32 0.0, %v566
      %v568 = vpop.f32.mrb[0].mxu0
      %569 = vdwg.mxu0
      %570 = vmatprep.subr.mxu0 %v484
      %571 = vmatpush1.xpose.msra.mxu0 %v483
      %572 = vmatprep.subr.mxu0 0.0
      %573 = vmatpush1.xpose.msra.mxu0 0.0
      %574 = vmatprep.subr.mxu0 0.0
      %575 = vmatpush1.xpose.msra.mxu0 0.0
      %576 = vmatprep.subr.mxu0 0.0
      %577 = vmatpush1.xpose.msra.mxu0 0.0
      %578 = vmatprep.subr.mxu0 0.0
      %579 = vmatpush1.xpose.msra.mxu0 0.0
      %580 = vmatprep.subr.mxu0 0.0
      %581 = vmatpush1.xpose.msra.mxu0 0.0
      %582 = vmatprep.subr.mxu0 0.0
      %583 = vmatpush1.xpose.msra.mxu0 0.0
      %584 = vmatprep.subr.mxu0 0.0
      %585 = vmatpush1.xpose.msra.mxu0 0.0
      %586 = vmatprep.subr.mxu0 0.0
      %587 = vmatpush1.xpose.msra.mxu0 0.0
      %588 = vmatprep.subr.mxu0 0.0
      %589 = vmatpush1.xpose.msra.mxu0 0.0
      %590 = vmatprep.subr.mxu0 0.0
      %591 = vmatpush1.xpose.msra.mxu0 0.0
      %592 = vmatprep.subr.mxu0 0.0
      %593 = vmatpush1.xpose.msra.mxu0 0.0
      %594 = vmatprep.subr.mxu0 0.0
      %595 = vmatpush1.xpose.msra.mxu0 0.0
      %596 = vmatprep.subr.mxu0 0.0
      %597 = vmatpush1.xpose.msra.mxu0 0.0
      %598 = vmatprep.subr.mxu0 0.0
      %599 = vmatpush1.xpose.msra.mxu0 0.0
      %600 = vmatprep.subr.mxu0 0.0
      %601 = vmatpush1.xpose.msra.mxu0 0.0
      %602 = vmatprep.subr.mxu0 0.0
      %603 = vmatpush1.xpose.msra.mxu0 0.0
      %604 = vmatprep.subr.mxu0 0.0
      %605 = vmatpush1.xpose.msra.mxu0 0.0
      %606 = vmatprep.subr.mxu0 0.0
      %607 = vmatpush1.xpose.msra.mxu0 0.0
      %608 = vmatprep.subr.mxu0 0.0
      %609 = vmatpush1.xpose.msra.mxu0 0.0
      %610 = vmatprep.subr.mxu0 0.0
      %611 = vmatpush1.xpose.msra.mxu0 0.0
      %612 = vmatprep.subr.mxu0 0.0
      %613 = vmatpush1.xpose.msra.mxu0 0.0
      %614 = vmatprep.subr.mxu0 0.0
      %615 = vmatpush1.xpose.msra.mxu0 0.0
      %616 = vmatprep.subr.mxu0 0.0
      %617 = vmatpush1.xpose.msra.mxu0 0.0
      %618 = vmatprep.subr.mxu0 0.0
      %619 = vmatpush1.xpose.msra.mxu0 0.0
      %620 = vmatprep.subr.mxu0 0.0
      %621 = vmatpush1.xpose.msra.mxu0 0.0
      %622 = vmatprep.subr.mxu0 0.0
      %623 = vmatpush1.xpose.msra.mxu0 0.0
      %624 = vmatprep.subr.mxu0 0.0
      %625 = vmatpush1.xpose.msra.mxu0 0.0
      %626 = vmatprep.subr.mxu0 0.0
      %627 = vmatpush1.xpose.msra.mxu0 0.0
      %628 = vmatprep.subr.mxu0 0.0
      %629 = vmatpush1.xpose.msra.mxu0 0.0
      %630 = vmatprep.subr.mxu0 0.0
      %631 = vmatpush1.xpose.msra.mxu0 0.0
      %632 = vmatprep.subr.mxu0 0.0
      %633 = vmatpush1.xpose.msra.mxu0 0.0
      %634 = vmatprep.mubr.f32.mxu0 %v472
      %635 = vmatmul.mubr.f32.gmra.mrb[0].mxu0 %v471
      %v636 = vpop.f32.mrb[0].mxu0
      %v637 = vadd.f32 0.0, %v636
      %v638 = vpop.f32.mrb[0].mxu0
      %639 = vmatprep.mubr.f32.mxu0 %v474
      %640 = vmatmul.mubr.f32.gmra.mrb[0].mxu0 %v473
      %v641 = vpop.f32.mrb[0].mxu0
      %v642 = vadd.f32 0.0, %v641
      %v643 = vpop.f32.mrb[0].mxu0
      %644 = vmatprep.mubr.f32.mxu0 %v476
      %645 = vmatmul.mubr.f32.gmra.mrb[0].mxu0 %v475
      %v646 = vpop.f32.mrb[0].mxu0
      %v647 = vadd.f32 0.0, %v646
      %v648 = vpop.f32.mrb[0].mxu0
      %649 = vmatprep.mubr.f32.mxu0 %v478
      %650 = vmatmul.mubr.f32.gmra.mrb[0].mxu0 %v477
      %v651 = vpop.f32.mrb[0].mxu0
      %v652 = vadd.f32 0.0, %v651
      %v653 = vpop.f32.mrb[0].mxu0
      %654 = vdwg.mxu0
      %v655 = vld [vmem:[%s276] sm:$0xff]
      %v656 = vld [vmem:[%s276 + $0x8] sm:$0xff]
      %v657 = vld [vmem:[%s276 + $0x10] sm:$0xff]
      %v658 = vld [vmem:[%s276 + $0x18] sm:$0x3f]
      %v659 = vadd.f32 %v655, %v552
      %v660 = vadd.f32 %v656, %v557
      %v661 = vadd.f32 %v657, %v562
      %v662 = vadd.f32 %v658, %v567
      %vm663 = vcmask 7168
      %664 = vst.msk [vmem:[%s276] sm:$0xff] %vm663, %v659
      %665 = vst.msk [vmem:[%s276 + $0x8] sm:$0xff] %vm663, %v660
      %666 = vst.msk [vmem:[%s276 + $0x10] sm:$0xff] %vm663, %v661
      %vm667 = vcmask 5120
      %668 = vst.msk [vmem:[%s276 + $0x18] sm:$0x3f] %vm667, %v662
      %v669 = vld [vmem:[%s285] sm:$0xff]
      %v670 = vld [vmem:[%s285 + $0x8] sm:$0xff]
      %v671 = vld [vmem:[%s285 + $0x10] sm:$0xff]
      %v672 = vld [vmem:[%s285 + $0x18] sm:$0x3f]
      %677 = vrot.lane.b32.xlu0 %v637, 127
      %v678 = vpop.permute.xlu0 %677
      %679 = vrot.lane.b32.xlu0 %v642, 127
      %v680 = vpop.permute.xlu0 %679
      %681 = vrot.lane.b32.xlu0 %v647, 127
      %v682 = vpop.permute.xlu0 %681
      %683 = vrot.lane.b32.xlu0 %v652, 127
      %v684 = vpop.permute.xlu0 %683
      %v689 = vadd.f32 %v669, %v678
      %v690 = vadd.f32 %v670, %v680
      %v691 = vadd.f32 %v671, %v682
      %v692 = vadd.f32 %v672, %v684
      %693 = vst.msk [vmem:[%s285] sm:$0xff] %vm663, %v689
      %694 = vst.msk [vmem:[%s285 + $0x8] sm:$0xff] %vm663, %v690
      %695 = vst.msk [vmem:[%s285 + $0x10] sm:$0xff] %vm663, %v691
      %696 = vst.msk [vmem:[%s285 + $0x18] sm:$0x3f] %vm667, %v692
      %p697 = scmp.lt.s32.totalorder %s20, 0
      %s698 = scalar_select %p697, %s20, 0
      %p699 = scmp.lt.s32.totalorder %s21, 1
      %s700 = scalar_select %p699, %s21, 1
      %s701 = smul.addr %s700, 4
      %s702 = smul.addr %s698, 8
      %s703 = sadd.s32 %s701, %s702
      %s704 = smul.addr %s703, 8
      %s705 = scalar_lea.vmem %s2, %s704
      %p706 = scmp.lt.s32.totalorder %s20, 0
      %s707 = scalar_select %p706, %s20, 0
      %p708 = scmp.lt.s32.totalorder %s21, 1
      %s709 = scalar_select %p708, %s21, 1
      %s710 = smul.addr %s709, 4
      %s711 = smul.addr %s707, 8
      %s712 = sadd.s32 %s710, %s711
      %s713 = smul.addr %s712, 8
      %s714 = scalar_lea.vmem %s3, %s713
      // Predicated region
      $region33: #{tpu_custom_call.1} parent=27 // pred_check
        %p715 = pneg %p114
      $region34: #{tpu_custom_call.1} parent=27 // pred_check_branch
        %717 = sbr.rel (%p715) target = $region36
      $region35: #{tpu_custom_call.1} parent=27 // pred_region
        _
      $region36: #{tpu_custom_call.1} parent=27 // pred_fallthru
        _
      // Predicated region
      $region37: #{tpu_custom_call.1} parent=27 // pred_check
        %p718 = pneg %p142
      $region38: #{tpu_custom_call.1} parent=27 // pred_check_branch
        %720 = sbr.rel (%p718) target = $region40
      $region39: #{tpu_custom_call.1} parent=27 // pred_region
        _
      $region40: #{tpu_custom_call.1} parent=27 // pred_fallthru
        _
    $region28: #{tpu_custom_call.1} parent=5 // pred_fallthru
      _
    %p721 = scmp.le.s32.totalorder 2, %s10
    // Predicated region
    $region41: #{tpu_custom_call.1} parent=5 // pred_check
      %p722 = pneg %p721
    $region42: #{tpu_custom_call.1} parent=5 // pred_check_branch
      %724 = sbr.rel (%p722) target = $region44
    $region43: #{tpu_custom_call.1} parent=5 // pred_region
      %s725 = ssub.s32 %s10, 2
      // Predicated region
      $region45: #{tpu_custom_call.1} parent=43 // pred_check
        %p726 = pneg %p120
      $region46: #{tpu_custom_call.1} parent=43 // pred_check_branch
        %728 = sbr.rel (%p726) target = $region48
      $region47: #{tpu_custom_call.1} parent=43 // pred_region
        %p729 = scmp.lt.s32.totalorder %s23, 0
        %s730 = scalar_select %p729, %s23, 0
        %p731 = scmp.lt.s32.totalorder %s24, 1
        %s732 = scalar_select %p731, %s24, 1
        %s733 = smul.addr %s732, 4
        %s734 = smul.addr %s730, 8
        %s735 = sadd.s32 %s733, %s734
        %s736 = smul.addr %s735, 8
        %s737 = scalar_lea.vmem %s2, %s736
      $region48: #{tpu_custom_call.1} parent=43 // pred_fallthru
        _
      // Predicated region
      $region49: #{tpu_custom_call.1} parent=43 // pred_check
        %p738 = pneg %p148
      $region50: #{tpu_custom_call.1} parent=43 // pred_check_branch
        %740 = sbr.rel (%p738) target = $region52
      $region51: #{tpu_custom_call.1} parent=43 // pred_region
        %p741 = scmp.lt.s32.totalorder %s23, 0
        %s742 = scalar_select %p741, %s23, 0
        %p743 = scmp.lt.s32.totalorder %s24, 1
        %s744 = scalar_select %p743, %s24, 1
        %s745 = smul.addr %s744, 4
        %s746 = smul.addr %s742, 8
        %s747 = sadd.s32 %s745, %s746
        %s748 = smul.addr %s747, 8
        %s749 = scalar_lea.vmem %s3, %s748
      $region52: #{tpu_custom_call.1} parent=43 // pred_fallthru
        _
    $region44: #{tpu_custom_call.1} parent=5 // pred_fallthru
      _
  $region6: #{tpu_custom_call.1} parent=0 // loop_footer
    %s14 = sadd.s32 1, %s10
  $region7: #{tpu_custom_call.1} parent=0 // loop_footer_branch
    %9 = sbr.rel target = $region3
  $region8: #{tpu_custom_call.1} parent=0 // loop_exit
    _

</llo_original>
